<compile_context>
chip_gen: v7x
topology: tpu7x:2x2x1
jax: 0.10.0
libtpu: 0.0.40
codegen_flags: <defaults>
</compile_context>

<pallas_src>
import numpy as np
import jax
import jax.numpy as jnp
from jax.experimental import pallas as pl
from jax.experimental.pallas import tpu as pltpu


def _round_up(x: int, m: int) -> int:
    return ((x + m - 1) // m) * m


# ----------------------------------------------------------------------------
# Pallas kernel: one (TILE_B, TILE_N) output tile = x_tile @ w_tile + bias.
# Fisher scaling is pre-folded into w, so the body is a single MXU matmul
# with an f32 epilogue bias add.
# ----------------------------------------------------------------------------
def _wtt_matmul_kernel(x_ref, w_ref, b_ref, o_ref):
    # x_ref : (TILE_B, K)       compute dtype (bf16 or f32)
    # w_ref : (K, TILE_N)       compute dtype (Fisher-scaled TT weight)
    # b_ref : (1, TILE_N)       f32
    # o_ref : (TILE_B, TILE_N)  f32
    y = jnp.dot(x_ref[...], w_ref[...], preferred_element_type=jnp.float32)
    o_ref[...] = (y + b_ref[...]).astype(o_ref.dtype)


def weighted_tt_linear(x, fisher_scaled, cores, bias,
                       *, compute_dtype=jnp.bfloat16, tile_b=512, tile_n=512):
    """x: (..., in_features). fisher_scaled: (in_features,) = sqrt(F.sum(0)) + alpha."""
    core0, core1 = cores
    m1, n1 = core0.shape[1], core0.shape[2]
    m2, n2 = core1.shape[1], core1.shape[2]
    in_features = m1 * m2
    out_features = n1 * n2
    assert x.shape[-1] == in_features, (x.shape, in_features)

    # --- glue (plain JAX, tiny): materialize the TT weight and fold 1/fi ----
    # W[m1, m2, n1, n2] -> (in_features, out_features); row-major ravel matches
    # tntorch's interleaved TTMatrix convention.
    # TODO(synk): for production-scale in*out, skip materialization and do the
    # TT contraction in-kernel as two MXU matmuls with cores resident in VMEM
    # (plus K/N tiling of the weight); at 32x32 the materialized path wins.
    W4 = jnp.einsum('aijb,bklc->ikjl',
                    core0.astype(jnp.float32), core1.astype(jnp.float32))
    W = W4.reshape(in_features, out_features)
    inv_fi = 1.0 / fisher_scaled.astype(jnp.float32)
    W = W * inv_fi[:, None]                      # (x/fi) @ W == x @ (W/fi[:,None])

    batch_shape = x.shape[:-1]
    B = int(np.prod(batch_shape)) if batch_shape else 1
    x2 = x.reshape(B, in_features)

    # --- tiling / padding ----------------------------------------------------
    K = in_features
    TILE_B = min(int(tile_b), _round_up(B, 8))          # multiple of 8 sublanes
    B_pad = _round_up(B, TILE_B)
    TILE_N = min(int(tile_n), _round_up(out_features, 128))   # multiple of 128
    N_pad = _round_up(out_features, TILE_N)              # lane-dense output

    if B_pad != B:
        x2 = jnp.pad(x2, ((0, B_pad - B), (0, 0)))
    if N_pad != out_features:
        W = jnp.pad(W, ((0, 0), (0, N_pad - out_features)))

    if bias is None:
        b2 = jnp.zeros((1, N_pad), jnp.float32)
    else:
        b2 = bias.reshape(1, out_features).astype(jnp.float32)
        if N_pad != out_features:
            b2 = jnp.pad(b2, ((0, 0), (0, N_pad - out_features)))

    x2 = x2.astype(compute_dtype)
    W = W.astype(compute_dtype)

    grid = (B_pad // TILE_B, N_pad // TILE_N)

    # --- resource hints ------------------------------------------------------
    act_bytes = jnp.dtype(compute_dtype).itemsize
    vmem_est = 2 * (TILE_B * K * act_bytes + K * TILE_N * act_bytes
                    + TILE_N * 4 + TILE_B * TILE_N * 4)
    vmem_limit = int(min(max(2 * vmem_est, 16 * 1024 * 1024), 48 * 1024 * 1024))
    cost = pl.CostEstimate(
        flops=2 * B_pad * K * N_pad,
        transcendentals=0,
        bytes_accessed=int(B_pad * K * act_bytes + K * N_pad * act_bytes
                           + N_pad * 4 + B_pad * N_pad * 4),
    )

    out = pl.pallas_call(
        _wtt_matmul_kernel,
        out_shape=jax.ShapeDtypeStruct((B_pad, N_pad), jnp.float32),
        grid=grid,
        in_specs=[
            pl.BlockSpec((TILE_B, K), lambda i, j: (i, 0)),        # x tile
            pl.BlockSpec((K, TILE_N), lambda i, j: (0, j)),        # weight tile
            pl.BlockSpec((1, TILE_N), lambda i, j: (0, j)),        # bias tile
        ],
        out_specs=pl.BlockSpec((TILE_B, TILE_N), lambda i, j: (i, j)),
        compiler_params=pltpu.CompilerParams(
            dimension_semantics=("parallel", "parallel"),
            vmem_limit_bytes=vmem_limit,
        ),
        cost_estimate=cost,
    )(x2, W, b2)

    out = out[:B, :out_features]
    return out.reshape(*batch_shape, out_features)


# ----------------------------------------------------------------------------
# Pure-JAX reference (einsum directly over the TT cores, like einsum_forward).
# ----------------------------------------------------------------------------
def reference_forward(x, fisher_scaled, cores, bias):
    core0, core1 = cores
    m1, m2 = core0.shape[1], core1.shape[1]
    n1, n2 = core0.shape[2], core1.shape[2]
    xs = x / fisher_scaled
    xr = xs.reshape(-1, m1, m2)
    y = jnp.einsum('bik,aijr,rklc->bjl', xr, core0, core1)
    y = y.reshape(*x.shape[:-1], n1 * n2)
    if bias is not None:
        y = y + bias
    return y


if __name__ == "__main__":
    # Small shapes consistent with the module:
    #   in_features = 32 = 4*8   (input_dims  = [4, 8])
    #   out_features = 32 = 8*4  (output_dims = [8, 4])
    #   ranks = [4]
    batch, seq = 2, 8
    in_features, out_features = 32, 32
    input_dims, output_dims, ranks = [4, 8], [8, 4], [4]
    alpha = 0.06

    key = jax.random.PRNGKey(0)
    k_fi, k_c0, k_c1, k_b, k_x = jax.random.split(key, 5)

    # fisher_information passed to WeightedTTLinear.__init__: (K, in_features)
    fisher_information = jax.random.uniform(k_fi, (5, in_features), jnp.float32)
    fisher_scaled = jnp.sqrt(fisher_information.sum(0)) + alpha

    # TT cores: core_i has shape (r_{i-1}, input_dims[i], output_dims[i], r_i)
    # TODO(synk): the PyTorch module obtains cores via tntorch TT-SVD of a random
    # init matrix; here cores are initialized directly (deterministic, same shapes).
    scale = 1.0 / np.sqrt(in_features)
    core0 = (2.0 * jax.random.uniform(
        k_c0, (1, input_dims[0], output_dims[0], ranks[0]), jnp.float32) - 1.0) * scale
    core1 = (2.0 * jax.random.uniform(
        k_c1, (ranks[0], input_dims[1], output_dims[1], 1), jnp.float32) - 1.0) * scale
    cores = (core0, core1)

    bias = (2.0 * jax.random.uniform(k_b, (out_features,), jnp.float32) - 1.0) \
        / np.sqrt(out_features)

    x = jax.random.normal(k_x, (batch, seq, in_features), jnp.float32)

    y_ref = jax.block_until_ready(reference_forward(x, fisher_scaled, cores, bias))

    # f32 compute path: tight tolerance (validates TT contraction + Fisher fold).
    y_f32 = jax.block_until_ready(
        weighted_tt_linear(x, fisher_scaled, cores, bias, compute_dtype=jnp.float32))
    assert y_f32.shape == (batch, seq, out_features), y_f32.shape
    np.testing.assert_allclose(np.asarray(y_f32), np.asarray(y_ref),
                               rtol=1e-4, atol=1e-5)

    # bf16 compute path (default, MXU-native): looser tolerance.
    y_bf16 = jax.block_until_ready(
        weighted_tt_linear(x, fisher_scaled, cores, bias))
    assert y_bf16.shape == (batch, seq, out_features), y_bf16.shape
    np.testing.assert_allclose(np.asarray(y_bf16), np.asarray(y_ref),
                               rtol=5e-2, atol=5e-2)

    print("KERNEL_OK")
</pallas_src>

<mosaic_0001>
module attributes {stable_mosaic.version = 11 : i64} {
  func.func @_wtt_matmul_kernel(%arg0: i32, %arg1: i32, %arg2: memref<16x32xf32, #tpu.memory_space<vmem>>, %arg3: memref<32x128xf32, #tpu.memory_space<vmem>>, %arg4: memref<1x128xf32, #tpu.memory_space<vmem>>, %arg5: memref<16x128xf32, #tpu.memory_space<vmem>>) attributes {dimension_semantics = [#tpu.dimension_semantics<parallel>, #tpu.dimension_semantics<parallel>], iteration_bounds = array<i64: 1, 1>, scalar_prefetch = 0 : i64, scratch_operands = 0 : i64, tpu.core_type = #tpu.core_type<tc>, window_params = [{transform_indices = @transform_0, window_bounds = array<i64: 16, 32>}, {transform_indices = @transform_1, window_bounds = array<i64: 32, 128>}, {transform_indices = @transform_2, window_bounds = array<i64: 1, 128>}, {transform_indices = @transform_3, window_bounds = array<i64: 16, 128>}]} {
    %c0 = arith.constant 0 : index
    %c0_0 = arith.constant 0 : index
    %0 = vector.load %arg2[%c0, %c0_0] : memref<16x32xf32, #tpu.memory_space<vmem>>, vector<16x32xf32>
    %c0_1 = arith.constant 0 : index
    %c0_2 = arith.constant 0 : index
    %1 = vector.load %arg3[%c0_1, %c0_2] : memref<32x128xf32, #tpu.memory_space<vmem>>, vector<32x128xf32>
    %cst = arith.constant dense<0.000000e+00> : vector<16x128xf32>
    %2 = tpu.matmul %0, %1, %cst {dimension_numbers = #tpu.dot_dimension_numbers<[1], [0], [0], [1], [0, 0, 1, 1], [], []>} : vector<16x32xf32>, vector<32x128xf32>, vector<16x128xf32> -> vector<16x128xf32>
    %c0_3 = arith.constant 0 : index
    %c0_4 = arith.constant 0 : index
    %3 = vector.load %arg4[%c0_3, %c0_4] : memref<1x128xf32, #tpu.memory_space<vmem>>, vector<1x128xf32>
    %4 = vector.broadcast %3 : vector<1x128xf32> to vector<16x128xf32>
    %5 = arith.addf %2, %4 : vector<16x128xf32>
    %c0_5 = arith.constant 0 : index
    %c0_6 = arith.constant 0 : index
    %6 = vector.load %arg5[%c0_5, %c0_6] : memref<16x128xf32, #tpu.memory_space<vmem>>, vector<16x128xf32>
    tpu.vector_store %arg5[%c0_5, %c0_6], %5 {strides = array<i32>} : memref<16x128xf32, #tpu.memory_space<vmem>>, vector<16x128xf32>,
    return
  }
  func.func @transform_0(%arg0: i32, %arg1: i32) -> (i32, i32) {
    %c0_i32 = arith.constant 0 : i32
    %c0_i32_0 = arith.constant 0 : i32
    return %arg0, %c0_i32 : i32, i32
  }
  func.func @transform_1(%arg0: i32, %arg1: i32) -> (i32, i32) {
    %c0_i32 = arith.constant 0 : i32
    %c0_i32_0 = arith.constant 0 : i32
    return %c0_i32, %arg1 : i32, i32
  }
  func.func @transform_2(%arg0: i32, %arg1: i32) -> (i32, i32) {
    %c0_i32 = arith.constant 0 : i32
    %c0_i32_0 = arith.constant 0 : i32
    return %c0_i32, %arg1 : i32, i32
  }
  func.func @transform_3(%arg0: i32, %arg1: i32) -> (i32, i32) {
    %c0_i32 = arith.constant 0 : i32
    return %arg0, %arg1 : i32, i32
  }
}

</mosaic_0001>

<llo_original>
// kernel: tpu_custom_call.1
$region0: #{tpu_custom_call.1}
  #allocation0 [shape = 'u32[]', space=smem, size = 0x4, offset = 0x4, fixed_abs, tag = 'smem constant byte address 0x4 - core index']
  #allocation1 [shape = 'u32[144,128]{1,0:T(1,128)}', space=vmem, size = 0x12000, scoped, tag = 'internal scratch']
  %s0 = inlined_call_operand.hbm [shape: f32[16,32], index: 0, kind: input, shape index: {}]
  %s1 = inlined_call_operand.hbm [shape: f32[32,128], index: 1, kind: input, shape index: {}]
  %s2 = inlined_call_operand.vmem [shape: f32[1,128], index: 2, kind: input, shape index: {}]
  %s3 = inlined_call_operand.hbm [shape: f32[16,128], index: 3, kind: output, shape index: {}]
  %s4 = sld [smem:[#allocation0]]
  $region30: #{tpu_custom_call.1} parent=0
    _
  %s6 = ssub.s32 1, %s4
  %s7 = scalar_select 0, %s6, %s4
  $region1: #{tpu_custom_call.1} parent=0
    #allocation2 [shape = 'u8[8192]{0}', space=vmem, size = 0x2000, scoped, tag = 'input window, operand 0, single buffered']
    #allocation3 [shape = 's32[1]{0}', space=sflag, size = 0x4, scoped, tag = 'scoped memory for tpu_custom_call.1']
    #allocation4 [shape = 's32[1]{0}', space=sflag, size = 0x4, scoped, tag = 'scoped memory for tpu_custom_call.1']
    #allocation5 [shape = 'u8[16384]{0}', space=vmem, size = 0x4000, scoped, tag = 'input window, operand 1, single buffered']
    #allocation6 [shape = 's32[1]{0}', space=sflag, size = 0x4, scoped, tag = 'scoped memory for tpu_custom_call.1']
    #allocation7 [shape = 'u8[8192]{0}', space=vmem, size = 0x2000, scoped, tag = 'output window, operand 0, single buffered']
    %8 = vsyncpa [#allocation3], 0
    %9 = vsyncpa [#allocation6], 0
    %10 = vsyncpa [#allocation4], 0
    // Predicated region
    $region2: #{tpu_custom_call.1} parent=1 // pred_check
      _
    $region3: #{tpu_custom_call.1} parent=1 // pred_check_branch
      %12 = sbr.rel (0) target = $region5
    $region4: #{tpu_custom_call.1} parent=1 // pred_region
      %s14 = ssub.s32 256, 256
      %15 = vsyncadd [#allocation3], %s14
      %s16 = sshll.u32 [#allocation2], 4
      %s17 = int_to_ptr.vmem [resolvable:$true] %s16
      %22 = dma.hbm_to_vmem [thread:$0]  %s0, 256, %s17, [#allocation3], 128, 128, 8
    $region5: #{tpu_custom_call.1} parent=1 // pred_fallthru
      _
    // Predicated region
    $region6: #{tpu_custom_call.1} parent=1 // pred_check
      _
    $region7: #{tpu_custom_call.1} parent=1 // pred_check_branch
      %24 = sbr.rel (0) target = $region9
    $region8: #{tpu_custom_call.1} parent=1 // pred_region
      %s26 = ssub.s32 512, 512
      %27 = vsyncadd [#allocation6], %s26
      %s28 = sshll.u32 [#allocation5], 4
      %s29 = int_to_ptr.vmem [resolvable:$true] %s28
      %34 = dma.hbm_to_vmem [thread:$0]  %s1, 512, %s29, [#allocation6], 128, 128, 8
    $region9: #{tpu_custom_call.1} parent=1 // pred_fallthru
      _
    // Predicated region
    $region10: #{tpu_custom_call.1} parent=1 // pred_check
      _
    $region11: #{tpu_custom_call.1} parent=1 // pred_check_branch
      %36 = sbr.rel (0) target = $region13
    $region12: #{tpu_custom_call.1} parent=1 // pred_region
      _
    $region13: #{tpu_custom_call.1} parent=1 // pred_fallthru
      _
    // Predicated region
    $region14: #{tpu_custom_call.1} parent=1 // pred_check
      _
    $region15: #{tpu_custom_call.1} parent=1 // pred_check_branch
      %38 = sbr.rel (0) target = $region17
    $region16: #{tpu_custom_call.1} parent=1 // pred_region
      %39 = dma.done [#allocation3], 256
    $region17: #{tpu_custom_call.1} parent=1 // pred_fallthru
      _
    // Predicated region
    $region18: #{tpu_custom_call.1} parent=1 // pred_check
      _
    $region19: #{tpu_custom_call.1} parent=1 // pred_check_branch
      %41 = sbr.rel (0) target = $region21
    $region20: #{tpu_custom_call.1} parent=1 // pred_region
      %42 = dma.done [#allocation6], 512
    $region21: #{tpu_custom_call.1} parent=1 // pred_fallthru
      _
    %v43 = vld [vmem:[#allocation2] sm:$0xff]
    %v44 = vld [vmem:[#allocation2 + $0x8] sm:$0xff]
    %v45 = vld [vmem:[#allocation5] sm:$0xff]
    %v46 = vld [vmem:[#allocation5 + $0x8] sm:$0xff]
    %v47 = vld [vmem:[#allocation5 + $0x10] sm:$0xff]
    %v48 = vld [vmem:[#allocation5 + $0x18] sm:$0xff]
    %v49 = vld [vmem:[%s2] sm:$0x1]
    %v51 = vlaneseq
    %v52 = vshrl.u32 %v51, 7
    %v53 = vsub.s32 0, %v52
    %v54 = vrot.slane %v49, %v53
    %vm56 = vcmask 261120
    %v58 = vsel %vm56, %v43, 0
    %v61 = vsel %vm56, %v44, 0
    %63 = vmatprep.subr.mxu0 0.0
    %64 = vmatpush1.msra.mxu0 %v45
    %65 = vmatprep.subr.mxu0 0.0
    %66 = vmatpush1.msra.mxu0 %v46
    %67 = vmatprep.subr.mxu0 0.0
    %68 = vmatpush1.msra.mxu0 %v47
    %69 = vmatprep.subr.mxu0 0.0
    %70 = vmatpush1.msra.mxu0 %v48
    %71 = vmatprep.subr.mxu0 0.0
    %72 = vmatpush1.msra.mxu0 0.0
    %73 = vmatprep.subr.mxu0 0.0
    %74 = vmatpush1.msra.mxu0 0.0
    %75 = vmatprep.subr.mxu0 0.0
    %76 = vmatpush1.msra.mxu0 0.0
    %77 = vmatprep.subr.mxu0 0.0
    %78 = vmatpush1.msra.mxu0 0.0
    %79 = vmatprep.subr.mxu0 0.0
    %80 = vmatpush1.msra.mxu0 0.0
    %81 = vmatprep.subr.mxu0 0.0
    %82 = vmatpush1.msra.mxu0 0.0
    %83 = vmatprep.subr.mxu0 0.0
    %84 = vmatpush1.msra.mxu0 0.0
    %85 = vmatprep.subr.mxu0 0.0
    %86 = vmatpush1.msra.mxu0 0.0
    %87 = vmatprep.subr.mxu0 0.0
    %88 = vmatpush1.msra.mxu0 0.0
    %89 = vmatprep.subr.mxu0 0.0
    %90 = vmatpush1.msra.mxu0 0.0
    %91 = vmatprep.subr.mxu0 0.0
    %92 = vmatpush1.msra.mxu0 0.0
    %93 = vmatprep.subr.mxu0 0.0
    %94 = vmatpush1.msra.mxu0 0.0
    %95 = vmatprep.subr.mxu0 0.0
    %96 = vmatpush1.msra.mxu0 0.0
    %97 = vmatprep.subr.mxu0 0.0
    %98 = vmatpush1.msra.mxu0 0.0
    %99 = vmatprep.subr.mxu0 0.0
    %100 = vmatpush1.msra.mxu0 0.0
    %101 = vmatprep.subr.mxu0 0.0
    %102 = vmatpush1.msra.mxu0 0.0
    %103 = vmatprep.subr.mxu0 0.0
    %104 = vmatpush1.msra.mxu0 0.0
    %105 = vmatprep.subr.mxu0 0.0
    %106 = vmatpush1.msra.mxu0 0.0
    %107 = vmatprep.subr.mxu0 0.0
    %108 = vmatpush1.msra.mxu0 0.0
    %109 = vmatprep.subr.mxu0 0.0
    %110 = vmatpush1.msra.mxu0 0.0
    %111 = vmatprep.subr.mxu0 0.0
    %112 = vmatpush1.msra.mxu0 0.0
    %113 = vmatprep.subr.mxu0 0.0
    %114 = vmatpush1.msra.mxu0 0.0
    %115 = vmatprep.subr.mxu0 0.0
    %116 = vmatpush1.msra.mxu0 0.0
    %117 = vmatprep.subr.mxu0 0.0
    %118 = vmatpush1.msra.mxu0 0.0
    %119 = vmatprep.subr.mxu0 0.0
    %120 = vmatpush1.msra.mxu0 0.0
    %121 = vmatprep.subr.mxu0 0.0
    %122 = vmatpush1.msra.mxu0 0.0
    %123 = vmatprep.subr.mxu0 0.0
    %124 = vmatpush1.msra.mxu0 0.0
    %125 = vmatprep.subr.mxu0 0.0
    %126 = vmatpush1.msra.mxu0 0.0
    %127 = vmatprep.mubr.f32.mxu0 0.0
    %128 = vmatmul.mubr.f32.gmra.mrb[0].mxu0 %v58
    %v129 = vpop.f32.mrb[0].mxu0
    %v130 = vadd.f32 %v54, %v129
    %v131 = vpop.f32.mrb[0].mxu0
    %132 = vmatprep.mubr.f32.mxu0 0.0
    %133 = vmatmul.mubr.f32.gmra.mrb[0].mxu0 %v61
    %v134 = vpop.f32.mrb[0].mxu0
    %v135 = vadd.f32 %v54, %v134
    %v136 = vpop.f32.mrb[0].mxu0
    %137 = vdwg.mxu0
    %138 = vst [vmem:[#allocation7] sm:$0xff] %v130
    %139 = vst [vmem:[#allocation7 + $0x8] sm:$0xff] %v135
    // Predicated region
    $region22: #{tpu_custom_call.1} parent=1 // pred_check
      _
    $region23: #{tpu_custom_call.1} parent=1 // pred_check_branch
      %141 = sbr.rel (0) target = $region25
    $region24: #{tpu_custom_call.1} parent=1 // pred_region
      %s143 = ssub.s32 256, 256
      %144 = vsyncadd [#allocation4], %s143
      %s145 = sshll.u32 [#allocation7], 4
      %s146 = int_to_ptr.vmem [resolvable:$true] %s145
      %151 = dma.vmem_to_hbm [thread:$0]  %s146, 256, %s3, [#allocation4], 128, 128, 8
    $region25: #{tpu_custom_call.1} parent=1 // pred_fallthru
      _
    // Predicated region
    $region26: #{tpu_custom_call.1} parent=1 // pred_check
      _
    $region27: #{tpu_custom_call.1} parent=1 // pred_check_branch
      %153 = sbr.rel (0) target = $region29
    $region28: #{tpu_custom_call.1} parent=1 // pred_region
      %154 = dma.done [#allocation4], 256
    $region29: #{tpu_custom_call.1} parent=1 // pred_fallthru
      _
    %155 = vsyncpa [#allocation3], 1
    %156 = vsyncpa [#allocation6], 1
    %157 = vsyncpa [#allocation4], 1

</llo_original>
